<compile_context>
chip_gen: v5e
topology: v5e:2x2
jax: 0.10.0
libtpu: 0.0.40
codegen_flags: <defaults>
</compile_context>

<pallas_src>
import functools

import jax
import jax.numpy as jnp
from jax.experimental import pallas as pl
from jax.experimental.pallas import tpu as pltpu

LANE = 128      # vreg lane width
SUBLANE = 16    # bf16 sublane packing (also a multiple of the f32 requirement of 8)


def _round_up(a, m):
    return (a + m - 1) // m * m


def mlp_kernel(x_ref, w1_ref, b1_ref, w2_ref, b2_ref,
               w3_ref, b3_ref, w4_ref, b4_ref, o_ref):
    """Fused 4-layer MLP: bf16 matmuls on the MXU with f32 accumulation,
    bias-add + ReLU on the VPU in f32 (hidden under the MXU work)."""
    # x arrives f32 straight from HBM; cast to the bf16 MXU path in-register.
    x = x_ref[...].astype(w1_ref.dtype)                                # (TB, in)

    h = jnp.dot(x, w1_ref[...], preferred_element_type=jnp.float32) + b1_ref[...]
    h = jnp.maximum(h, 0.0).astype(w2_ref.dtype)

    h = jnp.dot(h, w2_ref[...], preferred_element_type=jnp.float32) + b2_ref[...]
    h = jnp.maximum(h, 0.0).astype(w3_ref.dtype)

    h = jnp.dot(h, w3_ref[...], preferred_element_type=jnp.float32) + b3_ref[...]
    h = jnp.maximum(h, 0.0).astype(w4_ref.dtype)

    h = jnp.dot(h, w4_ref[...], preferred_element_type=jnp.float32) + b4_ref[...]
    o_ref[...] = h.astype(o_ref.dtype)                                 # lane-dense store


def prepare_params(params, compute_dtype=jnp.bfloat16):
    """One-time parameter conversion, hoisted out of the per-call forward:
    weights -> compute_dtype, biases -> (1, N) f32, and the final layer's
    output columns zero-padded to a full 128-lane width."""
    out_size = params["w4"].shape[1]
    out_pad = _round_up(out_size, LANE)
    prepped = {
        "w1": params["w1"].astype(compute_dtype),
        "w2": params["w2"].astype(compute_dtype),
        "w3": params["w3"].astype(compute_dtype),
        "w4": jnp.pad(params["w4"].astype(compute_dtype),
                      ((0, 0), (0, out_pad - out_size))),
        "b1": params["b1"].astype(jnp.float32).reshape(1, -1),
        "b2": params["b2"].astype(jnp.float32).reshape(1, -1),
        "b3": params["b3"].astype(jnp.float32).reshape(1, -1),
        "b4": jnp.pad(params["b4"].astype(jnp.float32).reshape(1, -1),
                      ((0, 0), (0, out_pad - out_size))),
    }
    return prepped, out_size


@functools.partial(jax.jit, static_argnames=("out_size", "tb_max"))
def disease_classifier_forward(x, prepped, *, out_size, tb_max=1024):
    """x: (B, input_size) float32. prepped: output of prepare_params."""
    B, in_size = x.shape
    out_pad = prepped["w4"].shape[1]

    # Batch tiling: large tiles amortize the ~0.35us/step overhead and MXU
    # fill/drain, but keep >= 2 grid steps once B is moderate so the
    # "parallel" batch axis actually feeds both TensorCores on v7x.
    if B <= SUBLANE:
        num_tiles = 1
    else:
        num_tiles = max(2, pl.cdiv(B, tb_max))
    TB = _round_up(pl.cdiv(B, num_tiles), SUBLANE)
    B_pad = _round_up(B, TB)
    grid = (B_pad // TB,)

    # Pad the batch only when needed; x stays f32 (cast in-kernel).
    x_p = x if B_pad == B else jnp.pad(x, ((0, B_pad - B), (0, 0)))

    operands = (x_p, prepped["w1"], prepped["b1"], prepped["w2"], prepped["b2"],
                prepped["w3"], prepped["b3"], prepped["w4"], prepped["b4"])

    h1, h2, h3 = prepped["w1"].shape[1], prepped["w2"].shape[1], prepped["w3"].shape[1]
    flops = 2 * B_pad * (in_size * h1 + h1 * h2 + h2 * h3 + h3 * out_pad)
    bytes_accessed = (sum(a.size * a.dtype.itemsize for a in operands)
                      + B_pad * out_pad * 4)
    cost = pl.CostEstimate(flops=flops, transcendentals=0,
                           bytes_accessed=bytes_accessed)

    # VMEM footprint estimate: resident weights/biases (x2 buffers), the
    # double-buffered x/out tiles and the f32 hidden activations. Only raise
    # the scoped-VMEM limit (v5e default 16 MiB) when we actually get close.
    resident_bytes = sum(prepped[k].size * prepped[k].dtype.itemsize for k in prepped)
    vmem_est = (2 * resident_bytes
                + 2 * TB * (in_size + out_pad) * 4
                + 4 * TB * h2 * 4)
    vmem_limit = None
    if vmem_est > 12 * 1024 * 1024:
        vmem_limit = min(2 * vmem_est, 48 * 1024 * 1024)

    # Weights/biases: full-array blocks with constant index_map -> VMEM-resident
    # across the whole batch grid. x/out: batch-tiled, double-buffered by Pallas.
    resident = lambda a: pl.BlockSpec(a.shape, lambda i: (0, 0))
    in_specs = [pl.BlockSpec((TB, in_size), lambda i: (i, 0))] + \
               [resident(a) for a in operands[1:]]

    out = pl.pallas_call(
        mlp_kernel,
        out_shape=jax.ShapeDtypeStruct((B_pad, out_pad), jnp.float32),
        grid=grid,
        in_specs=in_specs,
        out_specs=pl.BlockSpec((TB, out_pad), lambda i: (i, 0)),
        compiler_params=pltpu.CompilerParams(
            dimension_semantics=("parallel",),   # shard batch tiles across TCs on v7x
            vmem_limit_bytes=vmem_limit,
        ),
        cost_estimate=cost,
    )(*operands)

    if B_pad == B and out_pad == out_size:
        return out
    # TODO(synk): downstream consumers could take the padded (B_pad, out_pad)
    # array directly (or fuse softmax/argmax) to avoid this extra slice pass.
    return out[:B, :out_size]


def init_params(key, input_size, output_size):
    """Deterministic init mirroring the layer shapes of Disease_classifier."""
    sizes = [(input_size, 128), (128, 512), (512, 128), (128, output_size)]
    params = {}
    for i, (fan_in, fan_out) in enumerate(sizes, start=1):
        key, kw, kb = jax.random.split(key, 3)
        bound = 1.0 / jnp.sqrt(fan_in)
        params[f"w{i}"] = jax.random.uniform(
            kw, (fan_in, fan_out), jnp.float32, -bound, bound)
        params[f"b{i}"] = jax.random.uniform(
            kb, (1, fan_out), jnp.float32, -bound, bound)
    return params


def reference_forward(x, params, compute_dtype=jnp.float32):
    """Pure-JAX reference; compute_dtype=bf16 mirrors the kernel's casts."""
    h = x.astype(compute_dtype)
    for i in (1, 2, 3):
        h = jnp.dot(h, params[f"w{i}"].astype(compute_dtype),
                    preferred_element_type=jnp.float32) + params[f"b{i}"]
        h = jnp.maximum(h, 0.0).astype(compute_dtype)
    return jnp.dot(h, params["w4"].astype(compute_dtype),
                   preferred_element_type=jnp.float32) + params["b4"]


if __name__ == "__main__":
    key = jax.random.PRNGKey(0)
    batch, input_size, output_size = 2, 32, 10

    key, kx, kp = jax.random.split(key, 3)
    x = jax.random.normal(kx, (batch, input_size), jnp.float32)
    params = init_params(kp, input_size, output_size)

    # One-time parameter conversion (hoisted out of the per-call jit).
    prepped, out_size = prepare_params(params)

    out = jax.block_until_ready(
        disease_classifier_forward(x, prepped, out_size=out_size))
    assert out.shape == (batch, output_size)

    # Tight check against a bf16-mirrored reference (same casts as the kernel).
    ref_bf16 = reference_forward(x, params, compute_dtype=jnp.bfloat16)
    assert jnp.allclose(out, ref_bf16, atol=2e-3, rtol=2e-3), "mismatch vs bf16 reference"

    # Looser sanity check against the full-f32 reference (bf16 matmul rounding).
    ref_f32 = reference_forward(x, params, compute_dtype=jnp.float32)
    assert jnp.allclose(out, ref_f32, atol=5e-2, rtol=5e-2), "mismatch vs f32 reference"

    print("KERNEL_OK")
</pallas_src>

<mosaic_0001>
module attributes {stable_mosaic.version = 11 : i64} {
  func.func @mlp_kernel(%arg0: i32, %arg1: memref<16x32xf32, #tpu.memory_space<vmem>>, %arg2: memref<32x128xbf16, #tpu.memory_space<vmem>>, %arg3: memref<1x128xf32, #tpu.memory_space<vmem>>, %arg4: memref<128x512xbf16, #tpu.memory_space<vmem>>, %arg5: memref<1x512xf32, #tpu.memory_space<vmem>>, %arg6: memref<512x128xbf16, #tpu.memory_space<vmem>>, %arg7: memref<1x128xf32, #tpu.memory_space<vmem>>, %arg8: memref<128x128xbf16, #tpu.memory_space<vmem>>, %arg9: memref<1x128xf32, #tpu.memory_space<vmem>>, %arg10: memref<16x128xf32, #tpu.memory_space<vmem>>) attributes {dimension_semantics = [#tpu.dimension_semantics<parallel>], iteration_bounds = array<i64: 1>, scalar_prefetch = 0 : i64, scratch_operands = 0 : i64, tpu.core_type = #tpu.core_type<tc>, window_params = [{transform_indices = @transform_0, window_bounds = array<i64: 16, 32>}, {pipeline_mode = #tpu.pipeline_mode<synchronous>, transform_indices = @transform_1, window_bounds = array<i64: 32, 128>}, {pipeline_mode = #tpu.pipeline_mode<synchronous>, transform_indices = @transform_2, window_bounds = array<i64: 1, 128>}, {pipeline_mode = #tpu.pipeline_mode<synchronous>, transform_indices = @transform_3, window_bounds = array<i64: 128, 512>}, {pipeline_mode = #tpu.pipeline_mode<synchronous>, transform_indices = @transform_4, window_bounds = array<i64: 1, 512>}, {pipeline_mode = #tpu.pipeline_mode<synchronous>, transform_indices = @transform_5, window_bounds = array<i64: 512, 128>}, {pipeline_mode = #tpu.pipeline_mode<synchronous>, transform_indices = @transform_6, window_bounds = array<i64: 1, 128>}, {pipeline_mode = #tpu.pipeline_mode<synchronous>, transform_indices = @transform_7, window_bounds = array<i64: 128, 128>}, {pipeline_mode = #tpu.pipeline_mode<synchronous>, transform_indices = @transform_8, window_bounds = array<i64: 1, 128>}, {transform_indices = @transform_9, window_bounds = array<i64: 16, 128>}]} {
    %c0 = arith.constant 0 : index
    %c0_0 = arith.constant 0 : index
    %0 = vector.load %arg1[%c0, %c0_0] : memref<16x32xf32, #tpu.memory_space<vmem>>, vector<16x32xf32>
    %1 = arith.truncf %0 : vector<16x32xf32> to vector<16x32xbf16>
    %c0_1 = arith.constant 0 : index
    %c0_2 = arith.constant 0 : index
    %2 = vector.load %arg2[%c0_1, %c0_2] : memref<32x128xbf16, #tpu.memory_space<vmem>>, vector<32x128xbf16>
    %cst = arith.constant dense<0.000000e+00> : vector<16x128xf32>
    %3 = tpu.matmul %1, %2, %cst {dimension_numbers = #tpu.dot_dimension_numbers<[1], [0], [0], [1], [0, 0, 1, 1], [], []>} : vector<16x32xbf16>, vector<32x128xbf16>, vector<16x128xf32> -> vector<16x128xf32>
    %c0_3 = arith.constant 0 : index
    %c0_4 = arith.constant 0 : index
    %4 = vector.load %arg3[%c0_3, %c0_4] : memref<1x128xf32, #tpu.memory_space<vmem>>, vector<1x128xf32>
    %5 = vector.broadcast %4 : vector<1x128xf32> to vector<16x128xf32>
    %6 = arith.addf %3, %5 : vector<16x128xf32>
    %cst_5 = arith.constant 0.000000e+00 : f32
    %7 = vector.broadcast %cst_5 : f32 to vector<16x128xf32>
    %8 = arith.maximumf %6, %7 : vector<16x128xf32>
    %9 = arith.truncf %8 : vector<16x128xf32> to vector<16x128xbf16>
    %c0_6 = arith.constant 0 : index
    %c0_7 = arith.constant 0 : index
    %10 = vector.load %arg4[%c0_6, %c0_7] : memref<128x512xbf16, #tpu.memory_space<vmem>>, vector<128x512xbf16>
    %cst_8 = arith.constant dense<0.000000e+00> : vector<16x512xf32>
    %11 = tpu.matmul %9, %10, %cst_8 {dimension_numbers = #tpu.dot_dimension_numbers<[1], [0], [0], [1], [0, 0, 1, 1], [], []>} : vector<16x128xbf16>, vector<128x512xbf16>, vector<16x512xf32> -> vector<16x512xf32>
    %c0_9 = arith.constant 0 : index
    %c0_10 = arith.constant 0 : index
    %12 = vector.load %arg5[%c0_9, %c0_10] : memref<1x512xf32, #tpu.memory_space<vmem>>, vector<1x512xf32>
    %13 = vector.broadcast %12 : vector<1x512xf32> to vector<16x512xf32>
    %14 = arith.addf %11, %13 : vector<16x512xf32>
    %cst_11 = arith.constant 0.000000e+00 : f32
    %15 = vector.broadcast %cst_11 : f32 to vector<16x512xf32>
    %16 = arith.maximumf %14, %15 : vector<16x512xf32>
    %17 = arith.truncf %16 : vector<16x512xf32> to vector<16x512xbf16>
    %c0_12 = arith.constant 0 : index
    %c0_13 = arith.constant 0 : index
    %18 = vector.load %arg6[%c0_12, %c0_13] : memref<512x128xbf16, #tpu.memory_space<vmem>>, vector<512x128xbf16>
    %cst_14 = arith.constant dense<0.000000e+00> : vector<16x128xf32>
    %19 = tpu.matmul %17, %18, %cst_14 {dimension_numbers = #tpu.dot_dimension_numbers<[1], [0], [0], [1], [0, 0, 1, 1], [], []>} : vector<16x512xbf16>, vector<512x128xbf16>, vector<16x128xf32> -> vector<16x128xf32>
    %c0_15 = arith.constant 0 : index
    %c0_16 = arith.constant 0 : index
    %20 = vector.load %arg7[%c0_15, %c0_16] : memref<1x128xf32, #tpu.memory_space<vmem>>, vector<1x128xf32>
    %21 = vector.broadcast %20 : vector<1x128xf32> to vector<16x128xf32>
    %22 = arith.addf %19, %21 : vector<16x128xf32>
    %cst_17 = arith.constant 0.000000e+00 : f32
    %23 = vector.broadcast %cst_17 : f32 to vector<16x128xf32>
    %24 = arith.maximumf %22, %23 : vector<16x128xf32>
    %25 = arith.truncf %24 : vector<16x128xf32> to vector<16x128xbf16>
    %c0_18 = arith.constant 0 : index
    %c0_19 = arith.constant 0 : index
    %26 = vector.load %arg8[%c0_18, %c0_19] : memref<128x128xbf16, #tpu.memory_space<vmem>>, vector<128x128xbf16>
    %cst_20 = arith.constant dense<0.000000e+00> : vector<16x128xf32>
    %27 = tpu.matmul %25, %26, %cst_20 {dimension_numbers = #tpu.dot_dimension_numbers<[1], [0], [0], [1], [0, 0, 1, 1], [], []>} : vector<16x128xbf16>, vector<128x128xbf16>, vector<16x128xf32> -> vector<16x128xf32>
    %c0_21 = arith.constant 0 : index
    %c0_22 = arith.constant 0 : index
    %28 = vector.load %arg9[%c0_21, %c0_22] : memref<1x128xf32, #tpu.memory_space<vmem>>, vector<1x128xf32>
    %29 = vector.broadcast %28 : vector<1x128xf32> to vector<16x128xf32>
    %30 = arith.addf %27, %29 : vector<16x128xf32>
    %c0_23 = arith.constant 0 : index
    %c0_24 = arith.constant 0 : index
    %31 = vector.load %arg10[%c0_23, %c0_24] : memref<16x128xf32, #tpu.memory_space<vmem>>, vector<16x128xf32>
    tpu.vector_store %arg10[%c0_23, %c0_24], %30 {strides = array<i32>} : memref<16x128xf32, #tpu.memory_space<vmem>>, vector<16x128xf32>,
    return
  }
  func.func @transform_0(%arg0: i32) -> (i32, i32) {
    %c0_i32 = arith.constant 0 : i32
    %c0_i32_0 = arith.constant 0 : i32
    return %arg0, %c0_i32 : i32, i32
  }
  func.func @transform_1(%arg0: i32) -> (i32, i32) {
    %c0_i32 = arith.constant 0 : i32
    %c0_i32_0 = arith.constant 0 : i32
    %c0_i32_1 = arith.constant 0 : i32
    return %c0_i32, %c0_i32_0 : i32, i32
  }
  func.func @transform_2(%arg0: i32) -> (i32, i32) {
    %c0_i32 = arith.constant 0 : i32
    %c0_i32_0 = arith.constant 0 : i32
    %c0_i32_1 = arith.constant 0 : i32
    return %c0_i32, %c0_i32_0 : i32, i32
  }
  func.func @transform_3(%arg0: i32) -> (i32, i32) {
    %c0_i32 = arith.constant 0 : i32
    %c0_i32_0 = arith.constant 0 : i32
    %c0_i32_1 = arith.constant 0 : i32
    return %c0_i32, %c0_i32_0 : i32, i32
  }
  func.func @transform_4(%arg0: i32) -> (i32, i32) {
    %c0_i32 = arith.constant 0 : i32
    %c0_i32_0 = arith.constant 0 : i32
    %c0_i32_1 = arith.constant 0 : i32
    return %c0_i32, %c0_i32_0 : i32, i32
  }
  func.func @transform_5(%arg0: i32) -> (i32, i32) {
    %c0_i32 = arith.constant 0 : i32
    %c0_i32_0 = arith.constant 0 : i32
    %c0_i32_1 = arith.constant 0 : i32
    return %c0_i32, %c0_i32_0 : i32, i32
  }
  func.func @transform_6(%arg0: i32) -> (i32, i32) {
    %c0_i32 = arith.constant 0 : i32
    %c0_i32_0 = arith.constant 0 : i32
    %c0_i32_1 = arith.constant 0 : i32
    return %c0_i32, %c0_i32_0 : i32, i32
  }
  func.func @transform_7(%arg0: i32) -> (i32, i32) {
    %c0_i32 = arith.constant 0 : i32
    %c0_i32_0 = arith.constant 0 : i32
    %c0_i32_1 = arith.constant 0 : i32
    return %c0_i32, %c0_i32_0 : i32, i32
  }
  func.func @transform_8(%arg0: i32) -> (i32, i32) {
    %c0_i32 = arith.constant 0 : i32
    %c0_i32_0 = arith.constant 0 : i32
    %c0_i32_1 = arith.constant 0 : i32
    return %c0_i32, %c0_i32_0 : i32, i32
  }
  func.func @transform_9(%arg0: i32) -> (i32, i32) {
    %c0_i32 = arith.constant 0 : i32
    %c0_i32_0 = arith.constant 0 : i32
    return %arg0, %c0_i32 : i32, i32
  }
}

</mosaic_0001>

<llo_original>
// kernel: disease_classifier_forward.1
$region0: #{disease_classifier_forward.1}
  #allocation0 [shape = 'u32[]', space=smem, size = 0x4, offset = 0x4, fixed_abs, tag = 'smem constant byte address 0x4 - core index']
  #allocation1 [shape = 'u32[72,128]{1,0:T(1,128)}', space=vmem, size = 0x9000, scoped, tag = 'internal scratch']
  %s0 = inlined_call_operand.vmem [shape: f32[16,32], index: 0, kind: input, shape index: {}]
  %s1 = inlined_call_operand.vmem [shape: bf16[32,128], index: 1, kind: input, shape index: {}]
  %s2 = inlined_call_operand.vmem [shape: f32[1,128], index: 2, kind: input, shape index: {}]
  %s3 = inlined_call_operand.hbm [shape: bf16[128,512], index: 3, kind: input, shape index: {}]
  %s4 = inlined_call_operand.vmem [shape: f32[1,512], index: 4, kind: input, shape index: {}]
  %s5 = inlined_call_operand.hbm [shape: bf16[512,128], index: 5, kind: input, shape index: {}]
  %s6 = inlined_call_operand.vmem [shape: f32[1,128], index: 6, kind: input, shape index: {}]
  %s7 = inlined_call_operand.hbm [shape: bf16[128,128], index: 7, kind: input, shape index: {}]
  %s8 = inlined_call_operand.vmem [shape: f32[1,128], index: 8, kind: input, shape index: {}]
  %s9 = inlined_call_operand.vmem [shape: f32[16,128], index: 9, kind: output, shape index: {}]
  %s10 = sld [smem:[#allocation0]]
  $region58: #{disease_classifier_forward.1} parent=0
    _
  %s12 = ssub.s32 1, %s10
  %s13 = scalar_select 0, %s12, %s10
  $region1: #{disease_classifier_forward.1} parent=0
    #allocation2 [shape = 'u8[131072]{0}', space=vmem, size = 0x20000, scoped, tag = 'input window, operand 3, single buffered']
    #allocation3 [shape = 's32[1]{0}', space=sflag, size = 0x4, scoped, tag = 'scoped memory for disease_classifier_forward.1']
    #allocation4 [shape = 'u8[131072]{0}', space=vmem, size = 0x20000, scoped, tag = 'input window, operand 5, single buffered']
    #allocation5 [shape = 's32[1]{0}', space=sflag, size = 0x4, scoped, tag = 'scoped memory for disease_classifier_forward.1']
    #allocation6 [shape = 'u8[32768]{0}', space=vmem, size = 0x8000, scoped, tag = 'input window, operand 7, single buffered']
    %14 = vsyncpa [#allocation3], 0
    %15 = vsyncpa [#allocation5], 0
    // Predicated region
    $region2: #{disease_classifier_forward.1} parent=1 // pred_check
      _
    $region3: #{disease_classifier_forward.1} parent=1 // pred_check_branch
      %17 = sbr.rel (0) target = $region5
    $region4: #{disease_classifier_forward.1} parent=1 // pred_region
      _
    $region5: #{disease_classifier_forward.1} parent=1 // pred_fallthru
      _
    // Predicated region
    $region6: #{disease_classifier_forward.1} parent=1 // pred_check
      _
    $region7: #{disease_classifier_forward.1} parent=1 // pred_check_branch
      %19 = sbr.rel (0) target = $region9
    $region8: #{disease_classifier_forward.1} parent=1 // pred_region
      _
    $region9: #{disease_classifier_forward.1} parent=1 // pred_fallthru
      _
    // Predicated region
    $region10: #{disease_classifier_forward.1} parent=1 // pred_check
      _
    $region11: #{disease_classifier_forward.1} parent=1 // pred_check_branch
      %21 = sbr.rel (0) target = $region13
    $region12: #{disease_classifier_forward.1} parent=1 // pred_region
      _
    $region13: #{disease_classifier_forward.1} parent=1 // pred_fallthru
      _
    // Predicated region
    $region14: #{disease_classifier_forward.1} parent=1 // pred_check
      _
    $region15: #{disease_classifier_forward.1} parent=1 // pred_check_branch
      %23 = sbr.rel (0) target = $region17
    $region16: #{disease_classifier_forward.1} parent=1 // pred_region
      %25 = vsyncadd [#allocation3], 0
      %s26 = sshll.u32 %s3, 4
      %s27 = int_to_ptr.hbm [resolvable:$true] %s26
      %s28 = sshll.u32 [#allocation2], 4
      %s29 = int_to_ptr.vmem [resolvable:$true] %s28
      %34 = dma.hbm_to_vmem [thread:$0]  %s27, 4096, %s29, [#allocation3], 256, 256, 16
    $region17: #{disease_classifier_forward.1} parent=1 // pred_fallthru
      _
    // Predicated region
    $region18: #{disease_classifier_forward.1} parent=1 // pred_check
      _
    $region19: #{disease_classifier_forward.1} parent=1 // pred_check_branch
      %36 = sbr.rel (0) target = $region21
    $region20: #{disease_classifier_forward.1} parent=1 // pred_region
      _
    $region21: #{disease_classifier_forward.1} parent=1 // pred_fallthru
      _
    // Predicated region
    $region22: #{disease_classifier_forward.1} parent=1 // pred_check
      _
    $region23: #{disease_classifier_forward.1} parent=1 // pred_check_branch
      %38 = sbr.rel (0) target = $region25
    $region24: #{disease_classifier_forward.1} parent=1 // pred_region
      %40 = vsyncadd [#allocation5], 0
      %s41 = sshll.u32 %s5, 4
      %s42 = int_to_ptr.hbm [resolvable:$true] %s41
      %s43 = sshll.u32 [#allocation4], 4
      %s44 = int_to_ptr.vmem [resolvable:$true] %s43
      %49 = dma.hbm_to_vmem [thread:$0]  %s42, 4096, %s44, [#allocation5], 64, 64, 4
    $region25: #{disease_classifier_forward.1} parent=1 // pred_fallthru
      _
    // Predicated region
    $region26: #{disease_classifier_forward.1} parent=1 // pred_check
      _
    $region27: #{disease_classifier_forward.1} parent=1 // pred_check_branch
      %51 = sbr.rel (0) target = $region29
    $region28: #{disease_classifier_forward.1} parent=1 // pred_region
      _
    $region29: #{disease_classifier_forward.1} parent=1 // pred_fallthru
      _
    // Predicated region
    $region30: #{disease_classifier_forward.1} parent=1 // pred_check
      _
    $region31: #{disease_classifier_forward.1} parent=1 // pred_check_branch
      %53 = sbr.rel (0) target = $region33
    $region32: #{disease_classifier_forward.1} parent=1 // pred_region
      %55 = vsyncadd [#allocation5], 0
      %s56 = sshll.u32 %s7, 4
      %s57 = int_to_ptr.hbm [resolvable:$true] %s56
      %s58 = sshll.u32 [#allocation6], 4
      %s59 = int_to_ptr.vmem [resolvable:$true] %s58
      %64 = dma.hbm_to_vmem [thread:$0]  %s57, 1024, %s59, [#allocation5], 64, 64, 4
    $region33: #{disease_classifier_forward.1} parent=1 // pred_fallthru
      _
    // Predicated region
    $region34: #{disease_classifier_forward.1} parent=1 // pred_check
      _
    $region35: #{disease_classifier_forward.1} parent=1 // pred_check_branch
      %66 = sbr.rel (0) target = $region37
    $region36: #{disease_classifier_forward.1} parent=1 // pred_region
      _
    $region37: #{disease_classifier_forward.1} parent=1 // pred_fallthru
      _
    // Predicated region
    $region38: #{disease_classifier_forward.1} parent=1 // pred_check
      _
    $region39: #{disease_classifier_forward.1} parent=1 // pred_check_branch
      %68 = sbr.rel (0) target = $region41
    $region40: #{disease_classifier_forward.1} parent=1 // pred_region
      %70 = dma.done [#allocation3], 4096
    $region41: #{disease_classifier_forward.1} parent=1 // pred_fallthru
      _
    // Predicated region
    $region42: #{disease_classifier_forward.1} parent=1 // pred_check
      _
    $region43: #{disease_classifier_forward.1} parent=1 // pred_check_branch
      %72 = sbr.rel (0) target = $region45
    $region44: #{disease_classifier_forward.1} parent=1 // pred_region
      %74 = dma.done [#allocation5], 4096
    $region45: #{disease_classifier_forward.1} parent=1 // pred_fallthru
      _
    // Predicated region
    $region46: #{disease_classifier_forward.1} parent=1 // pred_check
      _
    $region47: #{disease_classifier_forward.1} parent=1 // pred_check_branch
      %76 = sbr.rel (0) target = $region49
    $region48: #{disease_classifier_forward.1} parent=1 // pred_region
      %78 = dma.done [#allocation5], 1024
    $region49: #{disease_classifier_forward.1} parent=1 // pred_fallthru
      _
    %v80 = vld [vmem:[%s0] sm:$0xff]
    %v81 = vld [vmem:[%s0 + $0x8] sm:$0xff]
    %v82 = vpack.c.bf16 %v81, %v80
    %v83 = vld [vmem:[%s1] sm:$0xf]
    %v84 = vld [vmem:[%s1 + $0x4] sm:$0xf]
    %v85 = vld [vmem:[%s1 + $0x8] sm:$0xf]
    %v86 = vld [vmem:[%s1 + $0xc] sm:$0xf]
    %v87 = vld [vmem:[%s2] sm:$0x1]
    %v89 = vperm.slane %v87, 0
    %v95 = vunpack.c.l.b16 %v83
    %v96 = vunpack.c.l.b16 %v84
    %v97 = vunpack.c.l.b16 %v85
    %v98 = vunpack.c.l.b16 %v86
    %v99 = vpack.c.b16 %v96, %v95
    %v100 = vpack.c.b16 %v98, %v97
    %vm103 = vcmask 261120
    %v105 = vsel %vm103, %v82, 0
    %107 = vmatpush.bf16.msra.mxu0 0
    %108 = vmatpush.bf16.msra.mxu0 0
    %109 = vmatpush.bf16.msra.mxu0 0
    %110 = vmatpush.bf16.msra.mxu0 0
    %111 = vmatpush.bf16.msra.mxu0 0
    %112 = vmatpush.bf16.msra.mxu0 0
    %113 = vmatpush.bf16.msra.mxu0 %v100
    %114 = vmatpush.bf16.msra.mxu0 %v99
    %115 = vmatmul.bf16.gmra.mxu0 %v105
    %v116 = vpop.f32.mrf.mxu0
    %v117 = vadd.f32 %v89, %v116
    %v118 = vpop.f32.mrf.mxu0
    %v119 = vadd.f32 %v89, %v118
    %120 = vdwg.mxu0
    %v121 = vmax.f32 %v117, 0.0
    %v122 = vmax.f32 %v119, 0.0
    %v123 = vpack.c.bf16 %v122, %v121
    %v124 = vld [vmem:[#allocation2] sm:$0xff]
    %v125 = vld [vmem:[#allocation2 + $0x8] sm:$0xff]
    %v126 = vld [vmem:[#allocation2 + $0x10] sm:$0xff]
    %v127 = vld [vmem:[#allocation2 + $0x18] sm:$0xff]
    %v128 = vld [vmem:[#allocation2 + $0x20] sm:$0xff]
    %v129 = vld [vmem:[#allocation2 + $0x28] sm:$0xff]
    %v130 = vld [vmem:[#allocation2 + $0x30] sm:$0xff]
    %v131 = vld [vmem:[#allocation2 + $0x38] sm:$0xff]
    %v132 = vld [vmem:[#allocation2 + $0x40] sm:$0xff]
    %v133 = vld [vmem:[#allocation2 + $0x48] sm:$0xff]
    %v134 = vld [vmem:[#allocation2 + $0x50] sm:$0xff]
    %v135 = vld [vmem:[#allocation2 + $0x58] sm:$0xff]
    %v136 = vld [vmem:[#allocation2 + $0x60] sm:$0xff]
    %v137 = vld [vmem:[#allocation2 + $0x68] sm:$0xff]
    %v138 = vld [vmem:[#allocation2 + $0x70] sm:$0xff]
    %v139 = vld [vmem:[#allocation2 + $0x78] sm:$0xff]
    %v140 = vld [vmem:[#allocation2 + $0x80] sm:$0xff]
    %v141 = vld [vmem:[#allocation2 + $0x88] sm:$0xff]
    %v142 = vld [vmem:[#allocation2 + $0x90] sm:$0xff]
    %v143 = vld [vmem:[#allocation2 + $0x98] sm:$0xff]
    %v144 = vld [vmem:[#allocation2 + $0xa0] sm:$0xff]
    %v145 = vld [vmem:[#allocation2 + $0xa8] sm:$0xff]
    %v146 = vld [vmem:[#allocation2 + $0xb0] sm:$0xff]
    %v147 = vld [vmem:[#allocation2 + $0xb8] sm:$0xff]
    %v148 = vld [vmem:[#allocation2 + $0xc0] sm:$0xff]
    %v149 = vld [vmem:[#allocation2 + $0xc8] sm:$0xff]
    %v150 = vld [vmem:[#allocation2 + $0xd0] sm:$0xff]
    %v151 = vld [vmem:[#allocation2 + $0xd8] sm:$0xff]
    %v152 = vld [vmem:[#allocation2 + $0xe0] sm:$0xff]
    %v153 = vld [vmem:[#allocation2 + $0xe8] sm:$0xff]
    %v154 = vld [vmem:[#allocation2 + $0xf0] sm:$0xff]
    %v155 = vld [vmem:[#allocation2 + $0xf8] sm:$0xff]
    %v156 = vld [vmem:[%s4] sm:$0xf]
    %v158 = vperm.slane %v156, 0
    %v159 = vperm.slane %v156, 1
    %v160 = vperm.slane %v156, 2
    %v161 = vperm.slane %v156, 3
    %v198 = vunpack.c.l.b16 %v124
    %v199 = vunpack.c.h.b16 %v124
    %v200 = vunpack.c.l.b16 %v125
    %v201 = vunpack.c.h.b16 %v125
    %v202 = vunpack.c.l.b16 %v126
    %v203 = vunpack.c.h.b16 %v126
    %v204 = vunpack.c.l.b16 %v127
    %v205 = vunpack.c.h.b16 %v127
    %v206 = vunpack.c.l.b16 %v128
    %v207 = vunpack.c.h.b16 %v128
    %v208 = vunpack.c.l.b16 %v129
    %v209 = vunpack.c.h.b16 %v129
    %v210 = vunpack.c.l.b16 %v130
    %v211 = vunpack.c.h.b16 %v130
    %v212 = vunpack.c.l.b16 %v131
    %v213 = vunpack.c.h.b16 %v131
    %v214 = vunpack.c.l.b16 %v132
    %v215 = vunpack.c.h.b16 %v132
    %v216 = vunpack.c.l.b16 %v133
    %v217 = vunpack.c.h.b16 %v133
    %v218 = vunpack.c.l.b16 %v134
    %v219 = vunpack.c.h.b16 %v134
    %v220 = vunpack.c.l.b16 %v135
    %v221 = vunpack.c.h.b16 %v135
    %v222 = vunpack.c.l.b16 %v136
    %v223 = vunpack.c.h.b16 %v136
    %v224 = vunpack.c.l.b16 %v137
    %v225 = vunpack.c.h.b16 %v137
    %v226 = vunpack.c.l.b16 %v138
    %v227 = vunpack.c.h.b16 %v138
    %v228 = vunpack.c.l.b16 %v139
    %v229 = vunpack.c.h.b16 %v139
    %v230 = vunpack.c.l.b16 %v140
    %v231 = vunpack.c.h.b16 %v140
    %v232 = vunpack.c.l.b16 %v141
    %v233 = vunpack.c.h.b16 %v141
    %v234 = vunpack.c.l.b16 %v142
    %v235 = vunpack.c.h.b16 %v142
    %v236 = vunpack.c.l.b16 %v143
    %v237 = vunpack.c.h.b16 %v143
    %v238 = vunpack.c.l.b16 %v144
    %v239 = vunpack.c.h.b16 %v144
    %v240 = vunpack.c.l.b16 %v145
    %v241 = vunpack.c.h.b16 %v145
    %v242 = vunpack.c.l.b16 %v146
    %v243 = vunpack.c.h.b16 %v146
    %v244 = vunpack.c.l.b16 %v147
    %v245 = vunpack.c.h.b16 %v147
    %v246 = vunpack.c.l.b16 %v148
    %v247 = vunpack.c.h.b16 %v148
    %v248 = vunpack.c.l.b16 %v149
    %v249 = vunpack.c.h.b16 %v149
    %v250 = vunpack.c.l.b16 %v150
    %v251 = vunpack.c.h.b16 %v150
    %v252 = vunpack.c.l.b16 %v151
    %v253 = vunpack.c.h.b16 %v151
    %v254 = vunpack.c.l.b16 %v152
    %v255 = vunpack.c.h.b16 %v152
    %v256 = vunpack.c.l.b16 %v153
    %v257 = vunpack.c.h.b16 %v153
    %v258 = vunpack.c.l.b16 %v154
    %v259 = vunpack.c.h.b16 %v154
    %v260 = vunpack.c.l.b16 %v155
    %v261 = vunpack.c.h.b16 %v155
    %v262 = vpack.c.b16 %v202, %v198
    %v263 = vpack.c.b16 %v203, %v199
    %v264 = vpack.c.b16 %v204, %v200
    %v265 = vpack.c.b16 %v205, %v201
    %v266 = vpack.c.b16 %v210, %v206
    %v267 = vpack.c.b16 %v211, %v207
    %v268 = vpack.c.b16 %v212, %v208
    %v269 = vpack.c.b16 %v213, %v209
    %v270 = vpack.c.b16 %v218, %v214
    %v271 = vpack.c.b16 %v219, %v215
    %v272 = vpack.c.b16 %v220, %v216
    %v273 = vpack.c.b16 %v221, %v217
    %v274 = vpack.c.b16 %v226, %v222
    %v275 = vpack.c.b16 %v227, %v223
    %v276 = vpack.c.b16 %v228, %v224
    %v277 = vpack.c.b16 %v229, %v225
    %v278 = vpack.c.b16 %v234, %v230
    %v279 = vpack.c.b16 %v235, %v231
    %v280 = vpack.c.b16 %v236, %v232
    %v281 = vpack.c.b16 %v237, %v233
    %v282 = vpack.c.b16 %v242, %v238
    %v283 = vpack.c.b16 %v243, %v239
    %v284 = vpack.c.b16 %v244, %v240
    %v285 = vpack.c.b16 %v245, %v241
    %v286 = vpack.c.b16 %v250, %v246
    %v287 = vpack.c.b16 %v251, %v247
    %v288 = vpack.c.b16 %v252, %v248
    %v289 = vpack.c.b16 %v253, %v249
    %v290 = vpack.c.b16 %v258, %v254
    %v291 = vpack.c.b16 %v259, %v255
    %v292 = vpack.c.b16 %v260, %v256
    %v293 = vpack.c.b16 %v261, %v257
    %326 = vmatpush.bf16.msra.mxu0 %v290
    %327 = vmatpush.bf16.msra.mxu0 %v286
    %328 = vmatpush.bf16.msra.mxu0 %v282
    %329 = vmatpush.bf16.msra.mxu0 %v278
    %330 = vmatpush.bf16.msra.mxu0 %v274
    %331 = vmatpush.bf16.msra.mxu0 %v270
    %332 = vmatpush.bf16.msra.mxu0 %v266
    %333 = vmatpush.bf16.msra.mxu0 %v262
    %334 = vmatmul.bf16.gmra.mxu0 %v123
    %v335 = vpop.f32.mrf.mxu0
    %v336 = vadd.f32 %v158, %v335
    %v337 = vpop.f32.mrf.mxu0
    %v338 = vadd.f32 %v158, %v337
    %339 = vdwg.mxu0
    %340 = vmatpush.bf16.msra.mxu0 %v291
    %341 = vmatpush.bf16.msra.mxu0 %v287
    %342 = vmatpush.bf16.msra.mxu0 %v283
    %343 = vmatpush.bf16.msra.mxu0 %v279
    %344 = vmatpush.bf16.msra.mxu0 %v275
    %345 = vmatpush.bf16.msra.mxu0 %v271
    %346 = vmatpush.bf16.msra.mxu0 %v267
    %347 = vmatpush.bf16.msra.mxu0 %v263
    %348 = vmatmul.bf16.gmra.mxu0 %v123
    %v349 = vpop.f32.mrf.mxu0
    %v350 = vadd.f32 %v159, %v349
    %v351 = vpop.f32.mrf.mxu0
    %v352 = vadd.f32 %v159, %v351
    %353 = vdwg.mxu0
    %354 = vmatpush.bf16.msra.mxu0 %v292
    %355 = vmatpush.bf16.msra.mxu0 %v288
    %356 = vmatpush.bf16.msra.mxu0 %v284
    %357 = vmatpush.bf16.msra.mxu0 %v280
    %358 = vmatpush.bf16.msra.mxu0 %v276
    %359 = vmatpush.bf16.msra.mxu0 %v272
    %360 = vmatpush.bf16.msra.mxu0 %v268
    %361 = vmatpush.bf16.msra.mxu0 %v264
    %362 = vmatmul.bf16.gmra.mxu0 %v123
    %v363 = vpop.f32.mrf.mxu0
    %v364 = vadd.f32 %v160, %v363
    %v365 = vpop.f32.mrf.mxu0
    %v366 = vadd.f32 %v160, %v365
    %367 = vdwg.mxu0
    %368 = vmatpush.bf16.msra.mxu0 %v293
    %369 = vmatpush.bf16.msra.mxu0 %v289
    %370 = vmatpush.bf16.msra.mxu0 %v285
    %371 = vmatpush.bf16.msra.mxu0 %v281
    %372 = vmatpush.bf16.msra.mxu0 %v277
    %373 = vmatpush.bf16.msra.mxu0 %v273
    %374 = vmatpush.bf16.msra.mxu0 %v269
    %375 = vmatpush.bf16.msra.mxu0 %v265
    %376 = vmatmul.bf16.gmra.mxu0 %v123
    %v377 = vpop.f32.mrf.mxu0
    %v378 = vadd.f32 %v161, %v377
    %v379 = vpop.f32.mrf.mxu0
    %v380 = vadd.f32 %v161, %v379
    %381 = vdwg.mxu0
    %v382 = vmax.f32 %v336, 0.0
    %v383 = vmax.f32 %v350, 0.0
    %v384 = vmax.f32 %v364, 0.0
    %v385 = vmax.f32 %v378, 0.0
    %v386 = vmax.f32 %v338, 0.0
    %v387 = vmax.f32 %v352, 0.0
    %v388 = vmax.f32 %v366, 0.0
    %v389 = vmax.f32 %v380, 0.0
    %v390 = vpack.c.bf16 %v386, %v382
    %v391 = vpack.c.bf16 %v387, %v383
    %v392 = vpack.c.bf16 %v388, %v384
    %v393 = vpack.c.bf16 %v389, %v385
    %v394 = vld [vmem:[#allocation4] sm:$0xf]
    %v395 = vld [vmem:[#allocation4 + $0x4] sm:$0xf]
    %v396 = vld [vmem:[#allocation4 + $0x8] sm:$0xf]
    %v397 = vld [vmem:[#allocation4 + $0xc] sm:$0xf]
    %v398 = vld [vmem:[#allocation4 + $0x10] sm:$0xf]
    %v399 = vld [vmem:[#allocation4 + $0x14] sm:$0xf]
    %v400 = vld [vmem:[#allocation4 + $0x18] sm:$0xf]
    %v401 = vld [vmem:[#allocation4 + $0x1c] sm:$0xf]
    %v402 = vld [vmem:[#allocation4 + $0x20] sm:$0xf]
    %v403 = vld [vmem:[#allocation4 + $0x24] sm:$0xf]
    %v404 = vld [vmem:[#allocation4 + $0x28] sm:$0xf]
    %v405 = vld [vmem:[#allocation4 + $0x2c] sm:$0xf]
    %v406 = vld [vmem:[#allocation4 + $0x30] sm:$0xf]
    %v407 = vld [vmem:[#allocation4 + $0x34] sm:$0xf]
    %v408 = vld [vmem:[#allocation4 + $0x38] sm:$0xf]
    %v409 = vld [vmem:[#allocation4 + $0x3c] sm:$0xf]
    %v410 = vld [vmem:[#allocation4 + $0x40] sm:$0xf]
    %v411 = vld [vmem:[#allocation4 + $0x44] sm:$0xf]
    %v412 = vld [vmem:[#allocation4 + $0x48] sm:$0xf]
    %v413 = vld [vmem:[#allocation4 + $0x4c] sm:$0xf]
    %v414 = vld [vmem:[#allocation4 + $0x50] sm:$0xf]
    %v415 = vld [vmem:[#allocation4 + $0x54] sm:$0xf]
    %v416 = vld [vmem:[#allocation4 + $0x58] sm:$0xf]
    %v417 = vld [vmem:[#allocation4 + $0x5c] sm:$0xf]
    %v418 = vld [vmem:[#allocation4 + $0x60] sm:$0xf]
    %v419 = vld [vmem:[#allocation4 + $0x64] sm:$0xf]
    %v420 = vld [vmem:[#allocation4 + $0x68] sm:$0xf]
    %v421 = vld [vmem:[#allocation4 + $0x6c] sm:$0xf]
    %v422 = vld [vmem:[#allocation4 + $0x70] sm:$0xf]
    %v423 = vld [vmem:[#allocation4 + $0x74] sm:$0xf]
    %v424 = vld [vmem:[#allocation4 + $0x78] sm:$0xf]
    %v425 = vld [vmem:[#allocation4 + $0x7c] sm:$0xf]
    %v426 = vld [vmem:[#allocation4 + $0x80] sm:$0xf]
    %v427 = vld [vmem:[#allocation4 + $0x84] sm:$0xf]
    %v428 = vld [vmem:[#allocation4 + $0x88] sm:$0xf]
    %v429 = vld [vmem:[#allocation4 + $0x8c] sm:$0xf]
    %v430 = vld [vmem:[#allocation4 + $0x90] sm:$0xf]
    %v431 = vld [vmem:[#allocation4 + $0x94] sm:$0xf]
    %v432 = vld [vmem:[#allocation4 + $0x98] sm:$0xf]
    %v433 = vld [vmem:[#allocation4 + $0x9c] sm:$0xf]
    %v434 = vld [vmem:[#allocation4 + $0xa0] sm:$0xf]
    %v435 = vld [vmem:[#allocation4 + $0xa4] sm:$0xf]
    %v436 = vld [vmem:[#allocation4 + $0xa8] sm:$0xf]
    %v437 = vld [vmem:[#allocation4 + $0xac] sm:$0xf]
    %v438 = vld [vmem:[#allocation4 + $0xb0] sm:$0xf]
    %v439 = vld [vmem:[#allocation4 + $0xb4] sm:$0xf]
    %v440 = vld [vmem:[#allocation4 + $0xb8] sm:$0xf]
    %v441 = vld [vmem:[#allocation4 + $0xbc] sm:$0xf]
    %v442 = vld [vmem:[#allocation4 + $0xc0] sm:$0xf]
    %v443 = vld [vmem:[#allocation4 + $0xc4] sm:$0xf]
    %v444 = vld [vmem:[#allocation4 + $0xc8] sm:$0xf]
    %v445 = vld [vmem:[#allocation4 + $0xcc] sm:$0xf]
    %v446 = vld [vmem:[#allocation4 + $0xd0] sm:$0xf]
    %v447 = vld [vmem:[#allocation4 + $0xd4] sm:$0xf]
    %v448 = vld [vmem:[#allocation4 + $0xd8] sm:$0xf]
    %v449 = vld [vmem:[#allocation4 + $0xdc] sm:$0xf]
    %v450 = vld [vmem:[#allocation4 + $0xe0] sm:$0xf]
    %v451 = vld [vmem:[#allocation4 + $0xe4] sm:$0xf]
    %v452 = vld [vmem:[#allocation4 + $0xe8] sm:$0xf]
    %v453 = vld [vmem:[#allocation4 + $0xec] sm:$0xf]
    %v454 = vld [vmem:[#allocation4 + $0xf0] sm:$0xf]
    %v455 = vld [vmem:[#allocation4 + $0xf4] sm:$0xf]
    %v456 = vld [vmem:[#allocation4 + $0xf8] sm:$0xf]
    %v457 = vld [vmem:[#allocation4 + $0xfc] sm:$0xf]
    %v458 = vld [vmem:[%s6] sm:$0x1]
    %v460 = vperm.slane %v458, 0
    %v526 = vunpack.c.l.b16 %v394
    %v527 = vunpack.c.l.b16 %v395
    %v528 = vunpack.c.l.b16 %v396
    %v529 = vunpack.c.l.b16 %v397
    %v530 = vunpack.c.l.b16 %v398
    %v531 = vunpack.c.l.b16 %v399
    %v532 = vunpack.c.l.b16 %v400
    %v533 = vunpack.c.l.b16 %v401
    %v534 = vunpack.c.l.b16 %v402
    %v535 = vunpack.c.l.b16 %v403
    %v536 = vunpack.c.l.b16 %v404
    %v537 = vunpack.c.l.b16 %v405
    %v538 = vunpack.c.l.b16 %v406
    %v539 = vunpack.c.l.b16 %v407
    %v540 = vunpack.c.l.b16 %v408
    %v541 = vunpack.c.l.b16 %v409
    %v542 = vunpack.c.l.b16 %v410
    %v543 = vunpack.c.l.b16 %v411
    %v544 = vunpack.c.l.b16 %v412
    %v545 = vunpack.c.l.b16 %v413
    %v546 = vunpack.c.l.b16 %v414
    %v547 = vunpack.c.l.b16 %v415
    %v548 = vunpack.c.l.b16 %v416
    %v549 = vunpack.c.l.b16 %v417
    %v550 = vunpack.c.l.b16 %v418
    %v551 = vunpack.c.l.b16 %v419
    %v552 = vunpack.c.l.b16 %v420
    %v553 = vunpack.c.l.b16 %v421
    %v554 = vunpack.c.l.b16 %v422
    %v555 = vunpack.c.l.b16 %v423
    %v556 = vunpack.c.l.b16 %v424
    %v557 = vunpack.c.l.b16 %v425
    %v558 = vunpack.c.l.b16 %v426
    %v559 = vunpack.c.l.b16 %v427
    %v560 = vunpack.c.l.b16 %v428
    %v561 = vunpack.c.l.b16 %v429
    %v562 = vunpack.c.l.b16 %v430
    %v563 = vunpack.c.l.b16 %v431
    %v564 = vunpack.c.l.b16 %v432
    %v565 = vunpack.c.l.b16 %v433
    %v566 = vunpack.c.l.b16 %v434
    %v567 = vunpack.c.l.b16 %v435
    %v568 = vunpack.c.l.b16 %v436
    %v569 = vunpack.c.l.b16 %v437
    %v570 = vunpack.c.l.b16 %v438
    %v571 = vunpack.c.l.b16 %v439
    %v572 = vunpack.c.l.b16 %v440
    %v573 = vunpack.c.l.b16 %v441
    %v574 = vunpack.c.l.b16 %v442
    %v575 = vunpack.c.l.b16 %v443
    %v576 = vunpack.c.l.b16 %v444
    %v577 = vunpack.c.l.b16 %v445
    %v578 = vunpack.c.l.b16 %v446
    %v579 = vunpack.c.l.b16 %v447
    %v580 = vunpack.c.l.b16 %v448
    %v581 = vunpack.c.l.b16 %v449
    %v582 = vunpack.c.l.b16 %v450
    %v583 = vunpack.c.l.b16 %v451
    %v584 = vunpack.c.l.b16 %v452
    %v585 = vunpack.c.l.b16 %v453
    %v586 = vunpack.c.l.b16 %v454
    %v587 = vunpack.c.l.b16 %v455
    %v588 = vunpack.c.l.b16 %v456
    %v589 = vunpack.c.l.b16 %v457
    %v590 = vpack.c.b16 %v527, %v526
    %v591 = vpack.c.b16 %v529, %v528
    %v592 = vpack.c.b16 %v531, %v530
    %v593 = vpack.c.b16 %v533, %v532
    %v594 = vpack.c.b16 %v535, %v534
    %v595 = vpack.c.b16 %v537, %v536
    %v596 = vpack.c.b16 %v539, %v538
    %v597 = vpack.c.b16 %v541, %v540
    %v598 = vpack.c.b16 %v543, %v542
    %v599 = vpack.c.b16 %v545, %v544
    %v600 = vpack.c.b16 %v547, %v546
    %v601 = vpack.c.b16 %v549, %v548
    %v602 = vpack.c.b16 %v551, %v550
    %v603 = vpack.c.b16 %v553, %v552
    %v604 = vpack.c.b16 %v555, %v554
    %v605 = vpack.c.b16 %v557, %v556
    %v606 = vpack.c.b16 %v559, %v558
    %v607 = vpack.c.b16 %v561, %v560
    %v608 = vpack.c.b16 %v563, %v562
    %v609 = vpack.c.b16 %v565, %v564
    %v610 = vpack.c.b16 %v567, %v566
    %v611 = vpack.c.b16 %v569, %v568
    %v612 = vpack.c.b16 %v571, %v570
    %v613 = vpack.c.b16 %v573, %v572
    %v614 = vpack.c.b16 %v575, %v574
    %v615 = vpack.c.b16 %v577, %v576
    %v616 = vpack.c.b16 %v579, %v578
    %v617 = vpack.c.b16 %v581, %v580
    %v618 = vpack.c.b16 %v583, %v582
    %v619 = vpack.c.b16 %v585, %v584
    %v620 = vpack.c.b16 %v587, %v586
    %v621 = vpack.c.b16 %v589, %v588
    %654 = vmatpush.bf16.msra.mxu0 %v597
    %655 = vmatpush.bf16.msra.mxu0 %v596
    %656 = vmatpush.bf16.msra.mxu0 %v595
    %657 = vmatpush.bf16.msra.mxu0 %v594
    %658 = vmatpush.bf16.msra.mxu0 %v593
    %659 = vmatpush.bf16.msra.mxu0 %v592
    %660 = vmatpush.bf16.msra.mxu0 %v591
    %661 = vmatpush.bf16.msra.mxu0 %v590
    %662 = vmatmul.bf16.gmra.mxu0 %v390
    %v663 = vpop.f32.mrf.mxu0
    %v664 = vadd.f32 %v460, %v663
    %v665 = vpop.f32.mrf.mxu0
    %v666 = vadd.f32 %v460, %v665
    %667 = vdwg.mxu0
    %668 = vmatpush.bf16.msra.mxu0 %v605
    %669 = vmatpush.bf16.msra.mxu0 %v604
    %670 = vmatpush.bf16.msra.mxu0 %v603
    %671 = vmatpush.bf16.msra.mxu0 %v602
    %672 = vmatpush.bf16.msra.mxu0 %v601
    %673 = vmatpush.bf16.msra.mxu0 %v600
    %674 = vmatpush.bf16.msra.mxu0 %v599
    %675 = vmatpush.bf16.msra.mxu0 %v598
    %676 = vmatmul.bf16.gmra.mxu0 %v391
    %v677 = vpop.f32.mrf.mxu0
    %v678 = vadd.f32 %v664, %v677
    %v679 = vpop.f32.mrf.mxu0
    %v680 = vadd.f32 %v666, %v679
    %681 = vdwg.mxu0
    %682 = vmatpush.bf16.msra.mxu0 %v613
    %683 = vmatpush.bf16.msra.mxu0 %v612
    %684 = vmatpush.bf16.msra.mxu0 %v611
    %685 = vmatpush.bf16.msra.mxu0 %v610
    %686 = vmatpush.bf16.msra.mxu0 %v609
    %687 = vmatpush.bf16.msra.mxu0 %v608
    %688 = vmatpush.bf16.msra.mxu0 %v607
    %689 = vmatpush.bf16.msra.mxu0 %v606
    %690 = vmatmul.bf16.gmra.mxu0 %v392
    %v691 = vpop.f32.mrf.mxu0
    %v692 = vadd.f32 %v678, %v691
    %v693 = vpop.f32.mrf.mxu0
    %v694 = vadd.f32 %v680, %v693
    %695 = vdwg.mxu0
    %696 = vmatpush.bf16.msra.mxu0 %v621
    %697 = vmatpush.bf16.msra.mxu0 %v620
    %698 = vmatpush.bf16.msra.mxu0 %v619
    %699 = vmatpush.bf16.msra.mxu0 %v618
    %700 = vmatpush.bf16.msra.mxu0 %v617
    %701 = vmatpush.bf16.msra.mxu0 %v616
    %702 = vmatpush.bf16.msra.mxu0 %v615
    %703 = vmatpush.bf16.msra.mxu0 %v614
    %704 = vmatmul.bf16.gmra.mxu0 %v393
    %v705 = vpop.f32.mrf.mxu0
    %v706 = vadd.f32 %v692, %v705
    %v707 = vpop.f32.mrf.mxu0
    %v708 = vadd.f32 %v694, %v707
    %709 = vdwg.mxu0
    %v710 = vmax.f32 %v706, 0.0
    %v711 = vmax.f32 %v708, 0.0
    %v712 = vpack.c.bf16 %v711, %v710
    %v713 = vld [vmem:[#allocation6] sm:$0xf]
    %v714 = vld [vmem:[#allocation6 + $0x4] sm:$0xf]
    %v715 = vld [vmem:[#allocation6 + $0x8] sm:$0xf]
    %v716 = vld [vmem:[#allocation6 + $0xc] sm:$0xf]
    %v717 = vld [vmem:[#allocation6 + $0x10] sm:$0xf]
    %v718 = vld [vmem:[#allocation6 + $0x14] sm:$0xf]
    %v719 = vld [vmem:[#allocation6 + $0x18] sm:$0xf]
    %v720 = vld [vmem:[#allocation6 + $0x1c] sm:$0xf]
    %v721 = vld [vmem:[#allocation6 + $0x20] sm:$0xf]
    %v722 = vld [vmem:[#allocation6 + $0x24] sm:$0xf]
    %v723 = vld [vmem:[#allocation6 + $0x28] sm:$0xf]
    %v724 = vld [vmem:[#allocation6 + $0x2c] sm:$0xf]
    %v725 = vld [vmem:[#allocation6 + $0x30] sm:$0xf]
    %v726 = vld [vmem:[#allocation6 + $0x34] sm:$0xf]
    %v727 = vld [vmem:[#allocation6 + $0x38] sm:$0xf]
    %v728 = vld [vmem:[#allocation6 + $0x3c] sm:$0xf]
    %v729 = vld [vmem:[%s8] sm:$0x1]
    %v731 = vperm.slane %v729, 0
    %v749 = vunpack.c.l.b16 %v713
    %v750 = vunpack.c.l.b16 %v714
    %v751 = vunpack.c.l.b16 %v715
    %v752 = vunpack.c.l.b16 %v716
    %v753 = vunpack.c.l.b16 %v717
    %v754 = vunpack.c.l.b16 %v718
    %v755 = vunpack.c.l.b16 %v719
    %v756 = vunpack.c.l.b16 %v720
    %v757 = vunpack.c.l.b16 %v721
    %v758 = vunpack.c.l.b16 %v722
    %v759 = vunpack.c.l.b16 %v723
    %v760 = vunpack.c.l.b16 %v724
    %v761 = vunpack.c.l.b16 %v725
    %v762 = vunpack.c.l.b16 %v726
    %v763 = vunpack.c.l.b16 %v727
    %v764 = vunpack.c.l.b16 %v728
    %v765 = vpack.c.b16 %v750, %v749
    %v766 = vpack.c.b16 %v752, %v751
    %v767 = vpack.c.b16 %v754, %v753
    %v768 = vpack.c.b16 %v756, %v755
    %v769 = vpack.c.b16 %v758, %v757
    %v770 = vpack.c.b16 %v760, %v759
    %v771 = vpack.c.b16 %v762, %v761
    %v772 = vpack.c.b16 %v764, %v763
    %781 = vmatpush.bf16.msra.mxu0 %v772
    %782 = vmatpush.bf16.msra.mxu0 %v771
    %783 = vmatpush.bf16.msra.mxu0 %v770
    %784 = vmatpush.bf16.msra.mxu0 %v769
    %785 = vmatpush.bf16.msra.mxu0 %v768
    %786 = vmatpush.bf16.msra.mxu0 %v767
    %787 = vmatpush.bf16.msra.mxu0 %v766
    %788 = vmatpush.bf16.msra.mxu0 %v765
    %789 = vmatmul.bf16.gmra.mxu0 %v712
    %v790 = vpop.f32.mrf.mxu0
    %v791 = vadd.f32 %v731, %v790
    %v792 = vpop.f32.mrf.mxu0
    %v793 = vadd.f32 %v731, %v792
    %794 = vdwg.mxu0
    %795 = vst [vmem:[%s9] sm:$0xff] %v791
    %796 = vst [vmem:[%s9 + $0x8] sm:$0xff] %v793
    // Predicated region
    $region50: #{disease_classifier_forward.1} parent=1 // pred_check
      _
    $region51: #{disease_classifier_forward.1} parent=1 // pred_check_branch
      %798 = sbr.rel (0) target = $region53
    $region52: #{disease_classifier_forward.1} parent=1 // pred_region
      _
    $region53: #{disease_classifier_forward.1} parent=1 // pred_fallthru
      _
    // Predicated region
    $region54: #{disease_classifier_forward.1} parent=1 // pred_check
      _
    $region55: #{disease_classifier_forward.1} parent=1 // pred_check_branch
      %800 = sbr.rel (0) target = $region57
    $region56: #{disease_classifier_forward.1} parent=1 // pred_region
      _
    $region57: #{disease_classifier_forward.1} parent=1 // pred_fallthru
      _
    %801 = vsyncpa [#allocation3], 1
    %802 = vsyncpa [#allocation5], 1

</llo_original>
